<compile_context>
chip_gen: v7x
topology: tpu7x:2x2x1
jax: 0.10.0
libtpu: 0.0.40
codegen_flags: <defaults>
</compile_context>

<pallas_src>
import functools
import math

import jax
import jax.numpy as jnp
from jax.experimental import pallas as pl
from jax.experimental.pallas import tpu as pltpu


def _eca_kernel(x_ref, w_ref, o_ref, *, k, pad):
    # x_ref block: (1, C, HW) in input dtype; w_ref: (k,) f32 in SMEM;
    # o_ref block: (1, C, HW) in input dtype.
    x = x_ref[0]                                                    # (C, HW)
    C = x.shape[0]

    # AdaptiveAvgPool2d(1): mean over all spatial positions, accumulated in f32.
    pooled = jnp.mean(x.astype(jnp.float32), axis=-1, keepdims=True)  # (C, 1) f32

    # Conv1d(1, 1, k, padding=(k-1)//2, bias=False) across the channel axis:
    #   y[c] = sum_j w[j] * pooled[c + j - pad], zero outside [0, C).
    # k static taps: sublane roll of the tiny pooled vreg + masked FMA.
    ch = jax.lax.broadcasted_iota(jnp.int32, (C, 1), 0)
    y = jnp.zeros((C, 1), jnp.float32)
    for j in range(k):
        off = j - pad                      # static source offset for this tap
        if off == 0:
            tap = pooled
        else:
            shift = (-off) % C             # static circular shift amount
            shifted = pltpu.roll(pooled, shift=shift, axis=0)
            src = ch + off
            tap = jnp.where((src >= 0) & (src < C), shifted, 0.0)
        y = y + w_ref[j] * tap

    gate = jax.nn.sigmoid(y).astype(x.dtype)                        # (C, 1)
    # Single pass over the slab in its native dtype (lane-broadcast multiply).
    o_ref[0] = x * gate


def eca_forward(x, conv_weight):
    """ECA layer forward.

    Args:
      x: (B, C, H, W) array (NCHW, matching PyTorch).  f32 or bf16.
      conv_weight: (k,) 1-D conv weight (PyTorch shape (1, 1, k) squeezed).
    Returns:
      (B, C, H, W) array, same dtype as x.
    """
    B, C, H, W = x.shape
    k = int(conv_weight.shape[0])
    pad = (k - 1) // 2
    HW = H * W

    x_flat = x.reshape(B, C, HW)
    w = conv_weight.astype(jnp.float32)

    elt = x.dtype.itemsize
    slab = C * HW * elt
    # Live VMEM ~= double-buffered input + output blocks (+ headroom).
    vmem_limit = int(min(max(4 * slab + (4 << 20), 32 << 20), 64 << 20))
    # TODO(synk): if 4*C*H*W*elt ever exceeds ~64 MiB (v7x VMEM), switch to a
    # two-pass HW-tiled variant (pooled reduction pass, then scale pass); also
    # consider a (B, HW, C) layout when H*W is not a multiple of 128.

    cost = pl.CostEstimate(
        flops=2 * B * C * HW,              # mean + broadcast multiply (approx)
        transcendentals=B * C,             # sigmoid
        bytes_accessed=2 * B * C * HW * elt + 4 * k,
    )

    out_flat = pl.pallas_call(
        functools.partial(_eca_kernel, k=k, pad=pad),
        out_shape=jax.ShapeDtypeStruct((B, C, HW), x.dtype),
        grid_spec=pltpu.PrefetchScalarGridSpec(
            num_scalar_prefetch=0,
            grid=(B,),
            in_specs=[
                pl.BlockSpec((1, C, HW), lambda b: (b, 0, 0)),
                pl.BlockSpec(memory_space=pltpu.MemorySpace.SMEM),
            ],
            out_specs=pl.BlockSpec((1, C, HW), lambda b: (b, 0, 0)),
        ),
        compiler_params=pltpu.CompilerParams(
            dimension_semantics=("parallel",),
            vmem_limit_bytes=vmem_limit,
        ),
        cost_estimate=cost,
    )(x_flat, w)

    return out_flat.reshape(B, C, H, W)


def make_eca_params(channels, gamma=2, b=1, seed=0):
    """Deterministic synthetic Conv1d weight, same shape logic as the module."""
    kernel_size = int(abs((math.log(channels, 2) + b) / gamma))
    kernel_size = kernel_size if kernel_size % 2 else kernel_size + 1
    key = jax.random.PRNGKey(seed)
    # PyTorch default init: U(-sqrt(1/(in_ch*k)), +sqrt(1/(in_ch*k))), in_ch=1
    bound = 1.0 / math.sqrt(kernel_size)
    w = jax.random.uniform(key, (kernel_size,), jnp.float32, -bound, bound)
    return w


if __name__ == "__main__":
    # Small shapes consistent with the module: batch=2, channels=32, 16x16
    # (channels=32 -> kernel_size=3, a non-trivial channel conv; H*W=256 is
    # lane-dense).
    B, C, H, W = 2, 32, 16, 16
    key = jax.random.PRNGKey(0)
    kx, _ = jax.random.split(key)
    x = jax.random.normal(kx, (B, C, H, W), jnp.float32)

    conv_w = make_eca_params(C)

    out = eca_forward(x, conv_w)
    jax.block_until_ready(out)

    # Sanity check against a pure-JAX reference of the same math.
    pooled = jnp.mean(x, axis=(2, 3))                        # (B, C)
    k = conv_w.shape[0]
    pad = (k - 1) // 2
    pooled_p = jnp.pad(pooled, ((0, 0), (pad, pad)))
    y_ref = jnp.stack(
        [sum(conv_w[j] * pooled_p[:, c + j] for j in range(k)) for c in range(C)],
        axis=1)                                              # (B, C)
    ref = x * jax.nn.sigmoid(y_ref)[:, :, None, None]
    assert jnp.allclose(out, ref, atol=1e-5, rtol=1e-5), "mismatch vs reference"

    print("KERNEL_OK")
</pallas_src>

<mosaic_0001>
module attributes {stable_mosaic.version = 11 : i64} {
  func.func @_eca_kernel(%arg0: i32, %arg1: memref<1x32x256xf32, #tpu.memory_space<vmem>>, %arg2: memref<3xf32, #tpu.memory_space<smem>>, %arg3: memref<1x32x256xf32, #tpu.memory_space<vmem>>) attributes {dimension_semantics = [#tpu.dimension_semantics<parallel>], iteration_bounds = array<i64: 2>, scalar_prefetch = 0 : i64, scratch_operands = 0 : i64, tpu.core_type = #tpu.core_type<tc>, window_params = [{transform_indices = @transform_0, window_bounds = array<i64: 1, 32, 256>}, {transform_indices = @transform_1, window_bounds = array<i64: 3>}, {transform_indices = @transform_2, window_bounds = array<i64: 1, 32, 256>}]} {
    %c0 = arith.constant 0 : index
    %c0_0 = arith.constant 0 : index
    %c0_1 = arith.constant 0 : index
    %0 = vector.load %arg1[%c0, %c0_0, %c0_1] : memref<1x32x256xf32, #tpu.memory_space<vmem>>, vector<1x32x256xf32>
    %1 = vector.shape_cast %0 : vector<1x32x256xf32> to vector<32x256xf32>
    %cst = arith.constant dense<0.000000e+00> : vector<32xf32>
    %2 = vector.multi_reduction <add>, %1, %cst [1] : vector<32x256xf32> to vector<32xf32>
    %3 = vector.shape_cast %2 : vector<32xf32> to vector<32x1xf32>
    %cst_2 = arith.constant 2.560000e+02 : f32
    %4 = vector.broadcast %cst_2 : f32 to vector<32x1xf32>
    %5 = arith.divf %3, %4 : vector<32x1xf32>
    %6 = tpu.iota {dimensions = array<i32: 0>} : vector<32x1xi32>
    %cst_3 = arith.constant 0.000000e+00 : f32
    %7 = vector.broadcast %cst_3 : f32 to vector<32x1xf32>
    %c1_i32 = arith.constant 1 : i32
    %8 = tpu.dynamic_rotate %5 by %c1_i32 dim 0 : vector<32x1xf32>, i32 -> vector<32x1xf32>
    %c-1_i32 = arith.constant -1 : i32
    %9 = vector.broadcast %c-1_i32 : i32 to vector<32x1xi32>
    %10 = arith.addi %6, %9 : vector<32x1xi32>
    %c0_i32 = arith.constant 0 : i32
    %11 = vector.broadcast %c0_i32 : i32 to vector<32x1xi32>
    %12 = arith.cmpi sge, %10, %11 : vector<32x1xi32>
    %c32_i32 = arith.constant 32 : i32
    %13 = vector.broadcast %c32_i32 : i32 to vector<32x1xi32>
    %14 = arith.cmpi slt, %10, %13 : vector<32x1xi32>
    %15 = arith.andi %12, %14 : vector<32x1xi1>
    %cst_4 = arith.constant 0.000000e+00 : f32
    %16 = vector.broadcast %cst_4 : f32 to vector<32x1xf32>
    %17 = arith.select %15, %8, %16 : vector<32x1xi1>, vector<32x1xf32>
    %c0_5 = arith.constant 0 : index
    %18 = memref.load %arg2[%c0_5] : memref<3xf32, #tpu.memory_space<smem>>
    %19 = vector.broadcast %18 : f32 to vector<32x1xf32>
    %20 = arith.mulf %19, %17 : vector<32x1xf32>
    %21 = arith.addf %7, %20 : vector<32x1xf32>
    %c1 = arith.constant 1 : index
    %22 = memref.load %arg2[%c1] : memref<3xf32, #tpu.memory_space<smem>>
    %23 = vector.broadcast %22 : f32 to vector<32x1xf32>
    %24 = arith.mulf %23, %5 : vector<32x1xf32>
    %25 = arith.addf %21, %24 : vector<32x1xf32>
    %c31_i32 = arith.constant 31 : i32
    %26 = tpu.dynamic_rotate %5 by %c31_i32 dim 0 : vector<32x1xf32>, i32 -> vector<32x1xf32>
    %c1_i32_6 = arith.constant 1 : i32
    %27 = vector.broadcast %c1_i32_6 : i32 to vector<32x1xi32>
    %28 = arith.addi %6, %27 : vector<32x1xi32>
    %c0_i32_7 = arith.constant 0 : i32
    %29 = vector.broadcast %c0_i32_7 : i32 to vector<32x1xi32>
    %30 = arith.cmpi sge, %28, %29 : vector<32x1xi32>
    %c32_i32_8 = arith.constant 32 : i32
    %31 = vector.broadcast %c32_i32_8 : i32 to vector<32x1xi32>
    %32 = arith.cmpi slt, %28, %31 : vector<32x1xi32>
    %33 = arith.andi %30, %32 : vector<32x1xi1>
    %cst_9 = arith.constant 0.000000e+00 : f32
    %34 = vector.broadcast %cst_9 : f32 to vector<32x1xf32>
    %35 = arith.select %33, %26, %34 : vector<32x1xi1>, vector<32x1xf32>
    %c2 = arith.constant 2 : index
    %36 = memref.load %arg2[%c2] : memref<3xf32, #tpu.memory_space<smem>>
    %37 = vector.broadcast %36 : f32 to vector<32x1xf32>
    %38 = arith.mulf %37, %35 : vector<32x1xf32>
    %39 = arith.addf %25, %38 : vector<32x1xf32>
    %40 = arith.negf %39 : vector<32x1xf32>
    %41 = math.exp %40 : vector<32x1xf32>
    %cst_10 = arith.constant 1.000000e+00 : f32
    %42 = vector.broadcast %cst_10 : f32 to vector<32x1xf32>
    %43 = arith.addf %42, %41 : vector<32x1xf32>
    %44 = arith.divf %42, %43 : vector<32x1xf32>
    %45 = vector.broadcast %44 : vector<32x1xf32> to vector<32x256xf32>
    %46 = arith.mulf %1, %45 : vector<32x256xf32>
    %c0_11 = arith.constant 0 : index
    %c0_12 = arith.constant 0 : index
    %c0_13 = arith.constant 0 : index
    %47 = vector.load %arg3[%c0_11, %c0_12, %c0_13] : memref<1x32x256xf32, #tpu.memory_space<vmem>>, vector<1x32x256xf32>
    %48 = vector.shape_cast %47 : vector<1x32x256xf32> to vector<32x256xf32>
    %49 = vector.shape_cast %46 : vector<32x256xf32> to vector<1x32x256xf32>
    tpu.vector_store %arg3[%c0_11, %c0_12, %c0_13], %49 {strides = array<i32>} : memref<1x32x256xf32, #tpu.memory_space<vmem>>, vector<1x32x256xf32>,
    return
  }
  func.func @transform_0(%arg0: i32) -> (i32, i32, i32) {
    %c0_i32 = arith.constant 0 : i32
    %c0_i32_0 = arith.constant 0 : i32
    %c0_i32_1 = arith.constant 0 : i32
    return %arg0, %c0_i32, %c0_i32_0 : i32, i32, i32
  }
  func.func @transform_1(%arg0: i32) -> i32 {
    %c0_i32 = arith.constant 0 : i32
    %c0_i32_0 = arith.constant 0 : i32
    return %c0_i32 : i32
  }
  func.func @transform_2(%arg0: i32) -> (i32, i32, i32) {
    %c0_i32 = arith.constant 0 : i32
    %c0_i32_0 = arith.constant 0 : i32
    %c0_i32_1 = arith.constant 0 : i32
    return %arg0, %c0_i32, %c0_i32_0 : i32, i32, i32
  }
}

</mosaic_0001>

<llo_original>
// kernel: tpu_custom_call.1
$region0: #{tpu_custom_call.1}
  #allocation0 [shape = 'u32[]', space=smem, size = 0x4, offset = 0x4, fixed_abs, tag = 'smem constant byte address 0x4 - core index']
  #allocation1 [shape = 'u32[144,128]{1,0:T(1,128)}', space=vmem, size = 0x12000, scoped, tag = 'internal scratch']
  %s0 = inlined_call_operand.hbm [shape: f32[2,32,256], index: 0, kind: input, shape index: {}]
  %s1 = inlined_call_operand.vmem [shape: f32[3], index: 1, kind: input, shape index: {}]
  %s2 = inlined_call_operand.hbm [shape: f32[2,32,256], index: 2, kind: output, shape index: {}]
  %s3 = sld [smem:[#allocation0]]
  $region49: #{tpu_custom_call.1} parent=0
    _
  %s5 = ssub.s32 1, %s3
  %s6 = scalar_select 0, %s5, %s3
  $region1: #{tpu_custom_call.1} parent=0
    #allocation2 [shape = 'u8[65536]{0}', space=vmem, size = 0x10000, scoped, tag = 'input window, operand 0']
    #allocation3 [shape = 's32[2]{0}', space=sflag, size = 0x8, scoped, tag = 'scoped memory for tpu_custom_call.1']
    #allocation4 [shape = 's32[2]{0}', space=sflag, size = 0x8, scoped, tag = 'scoped memory for tpu_custom_call.1']
    #allocation5 [shape = 's32[2]{0}', space=sflag, size = 0x8, scoped, tag = 'scoped memory for tpu_custom_call.1']
    #allocation6 [shape = 'u8[512]{0}', space=smem, size = 0x200, scoped, tag = 'input window, operand 1, single buffered']
    #allocation7 [shape = 'u8[65536]{0}', space=vmem, size = 0x10000, scoped, tag = 'output window, operand 0']
    %7 = vsyncpa [#allocation3], 0
    %s8 = scalar_lea.sflag [#allocation3], 1
    %9 = vsyncpa %s8, 0
    %10 = vsyncpa [#allocation5], 0
    %11 = vsyncpa [#allocation4], 0
    %s12 = scalar_lea.sflag [#allocation4], 1
    %13 = vsyncpa %s12, 0
    loop: start=0, step=1, limit=4
    $region2: #{tpu_custom_call.1} parent=1 // loop_pre_header
      _
    $region3: #{tpu_custom_call.1} parent=1 // loop_header
      %s15 = sphi 0, %s19
      %p16 = scmp.ge.s32.totalorder %s15, 4
      %s25 = sphi 0, %s27
      %s28 = sphi 0, %s25
      %s29 = sphi 0, %s28
      %s45 = sphi 0, %s29
      %s49 = sphi 0, %s49
      %s51 = sphi 0, %s49
      %s52 = sphi 0, %s51
      %s66 = sphi 0, %s52
      %s72 = sphi 0, %s74
      %s75 = sphi 0, %s72
      %s76 = sphi 0, %s75
      %s92 = sphi 0, %s76
    $region4: #{tpu_custom_call.1} parent=1 // loop_header_branch
      %18 = sbr.rel (%p16) target = $region8
    $region5: #{tpu_custom_call.1} parent=1 // loop_body
      %s20 = ssub.s32 %s15, 1
      %s21 = ssub.s32 %s15, 2
      %s22 = sadd.s32 %s15, 1
      %s23 = ssub.s32 %s15, %s22
      %p24 = scmp.eq.s32.totalorder %s23, 0
      %s26 = sadd.s32 %s25, 1
      %s27 = scalar_select %p24, %s25, %s26
      %p30 = pneg %p24
      %p31 = scmp.eq.s32.totalorder %s15, 1
      %p32 = por %p30, %p31
      %p33 = scmp.ne.s32.totalorder %s25, %s28
      %p34 = scmp.eq.s32.totalorder %s15, 0
      %p35 = por %p33, %p34
      %p36 = scmp.ne.s32.totalorder %s25, %s28
      %p37 = scmp.eq.s32.totalorder %s20, 1
      %p38 = por %p36, %p37
      %p39 = scmp.ne.s32.totalorder %s28, %s29
      %p40 = scmp.eq.s32.totalorder %s20, 0
      %p41 = por %p39, %p40
      %p42 = scmp.ne.s32.totalorder %s28, %s29
      %p43 = scmp.eq.s32.totalorder %s21, 1
      %p44 = por %p42, %p43
      %p46 = scmp.ne.s32.totalorder %s29, %s45
      %p47 = scmp.eq.s32.totalorder %s21, 0
      %p48 = por %p46, %p47
      %s50 = sadd.s32 %s49, 1
      %p53 = scmp.eq.s32.totalorder %s15, 1
      %p54 = scmp.ne.s32.totalorder %s49, %s51
      %p55 = scmp.eq.s32.totalorder %s15, 0
      %p56 = por %p54, %p55
      %p57 = scmp.ne.s32.totalorder %s49, %s51
      %p58 = scmp.eq.s32.totalorder %s20, 1
      %p59 = por %p57, %p58
      %p60 = scmp.ne.s32.totalorder %s51, %s52
      %p61 = scmp.eq.s32.totalorder %s20, 0
      %p62 = por %p60, %p61
      %p63 = scmp.ne.s32.totalorder %s51, %s52
      %p64 = scmp.eq.s32.totalorder %s21, 1
      %p65 = por %p63, %p64
      %p67 = scmp.ne.s32.totalorder %s52, %s66
      %p68 = scmp.eq.s32.totalorder %s21, 0
      %p69 = por %p67, %p68
      %s70 = ssub.s32 %s15, %s22
      %p71 = scmp.eq.s32.totalorder %s70, 0
      %s73 = sadd.s32 %s72, 1
      %s74 = scalar_select %p71, %s72, %s73
      %p77 = pneg %p71
      %p78 = scmp.eq.s32.totalorder %s15, 1
      %p79 = por %p77, %p78
      %p80 = scmp.ne.s32.totalorder %s72, %s75
      %p81 = scmp.eq.s32.totalorder %s15, 0
      %p82 = por %p80, %p81
      %p83 = scmp.ne.s32.totalorder %s72, %s75
      %p84 = scmp.eq.s32.totalorder %s20, 1
      %p85 = por %p83, %p84
      %p86 = scmp.ne.s32.totalorder %s75, %s76
      %p87 = scmp.eq.s32.totalorder %s20, 0
      %p88 = por %p86, %p87
      %p89 = scmp.ne.s32.totalorder %s75, %s76
      %p90 = scmp.eq.s32.totalorder %s21, 1
      %p91 = por %p89, %p90
      %p93 = scmp.ne.s32.totalorder %s76, %s92
      %p94 = scmp.eq.s32.totalorder %s21, 0
      %p95 = por %p93, %p94
      %p96 = scmp.le.s32.totalorder 1, %s15
      %p97 = scmp.lt.s32.totalorder %s15, 3
      %p98 = pnand %p96, %p97
      %p99 = pneg %p98
      // Predicated region
      $region9: #{tpu_custom_call.1} parent=5 // pred_check
        _
      $region10: #{tpu_custom_call.1} parent=5 // pred_check_branch
        %101 = sbr.rel (%p98) target = $region12
      $region11: #{tpu_custom_call.1} parent=5 // pred_region
        %s102 = ssub.s32 %s15, 1
        // Predicated region
        $region13: #{tpu_custom_call.1} parent=11 // pred_check
          %p103 = pneg %p62
        $region14: #{tpu_custom_call.1} parent=11 // pred_check_branch
          %105 = sbr.rel (%p103) target = $region16
        $region15: #{tpu_custom_call.1} parent=11 // pred_region
          %s107 = ssub.s32 16, 16
          %108 = vsyncadd [#allocation5], %s107
          %s110 = sshll.u32 %s1, 4
          %s111 = int_to_ptr.vmem [resolvable:$true] %s110
          %113 = dma.vmem_to_smem %s111, 16, [#allocation6], [#allocation5]
        $region16: #{tpu_custom_call.1} parent=11 // pred_fallthru
          _
      $region12: #{tpu_custom_call.1} parent=5 // pred_fallthru
        _
      %p114 = scmp.lt.s32.totalorder %s15, 2
      // Predicated region
      $region17: #{tpu_custom_call.1} parent=5 // pred_check
        %p115 = pneg %p114
      $region18: #{tpu_custom_call.1} parent=5 // pred_check_branch
        %117 = sbr.rel (%p115) target = $region20
      $region19: #{tpu_custom_call.1} parent=5 // pred_region
        // Predicated region
        $region21: #{tpu_custom_call.1} parent=19 // pred_check
          %p118 = pneg %p35
        $region22: #{tpu_custom_call.1} parent=19 // pred_check_branch
          %120 = sbr.rel (%p118) target = $region24
        $region23: #{tpu_custom_call.1} parent=19 // pred_region
          %s121 = sand.u32 %s25, 1
          %s122 = scalar_lea.sflag [#allocation3], %s121
          %s123 = sand.u32 %s25, 1
          %s124 = smul.addr %s123, 64
          %s125 = scalar_lea.vmem [#allocation2], %s124
          %s127 = ssub.s32 1024, 1024
          %128 = vsyncadd %s122, %s127
          %s129 = smul.addr %s15, 8
          %s130 = smul.addr %s129, 128
          %s131 = scalar_lea.hbm %s0, %s130
          %s132 = sshll.u32 %s125, 4
          %s133 = int_to_ptr.vmem [resolvable:$true] %s132
          %138 = dma.hbm_to_vmem [thread:$0]  %s131, 1024, %s133, %s122, 256, 256, 16
        $region24: #{tpu_custom_call.1} parent=19 // pred_fallthru
          _
      $region20: #{tpu_custom_call.1} parent=5 // pred_fallthru
        _
      %p139 = scmp.le.s32.totalorder 1, %s15
      %p140 = scmp.lt.s32.totalorder %s15, 3
      %p141 = pnand %p139, %p140
      %p142 = pneg %p141
      // Predicated region
      $region25: #{tpu_custom_call.1} parent=5 // pred_check
        _
      $region26: #{tpu_custom_call.1} parent=5 // pred_check_branch
        %144 = sbr.rel (%p141) target = $region28
      $region27: #{tpu_custom_call.1} parent=5 // pred_region
        %s145 = ssub.s32 %s15, 1
        %s146 = sand.u32 %s28, 1
        %s147 = scalar_lea.sflag [#allocation3], %s146
        %s148 = sand.u32 %s28, 1
        %s149 = smul.addr %s148, 64
        %s150 = scalar_lea.vmem [#allocation2], %s149
        // Predicated region
        $region29: #{tpu_custom_call.1} parent=27 // pred_check
          %p151 = pneg %p41
        $region30: #{tpu_custom_call.1} parent=27 // pred_check_branch
          %153 = sbr.rel (%p151) target = $region32
        $region31: #{tpu_custom_call.1} parent=27 // pred_region
          %154 = dma.done %s147, 1024
        $region32: #{tpu_custom_call.1} parent=27 // pred_fallthru
          _
        // Predicated region
        $region33: #{tpu_custom_call.1} parent=27 // pred_check
          %p155 = pneg %p62
        $region34: #{tpu_custom_call.1} parent=27 // pred_check_branch
          %157 = sbr.rel (%p155) target = $region36
        $region35: #{tpu_custom_call.1} parent=27 // pred_region
          %158 = dma.done [#allocation5], 16
        $region36: #{tpu_custom_call.1} parent=27 // pred_fallthru
          _
        %159 = sfence
        %s160 = sand.u32 %s28, 1
        %s161 = scalar_lea.sflag [#allocation3], %s160
        %s162 = sand.u32 %s28, 1
        %s163 = smul.addr %s162, 64
        %s164 = scalar_lea.vmem [#allocation2], %s163
        %p165 = pneg %p41
        %p166 = pneg %p38
        %p167 = pneg %p62
        %p168 = pneg %p59
        %p169 = pneg %p88
        %p170 = pneg %p85
        %s171 = sand.u32 %s75, 1
        %s172 = scalar_lea.sflag [#allocation4], %s171
        %s173 = sand.u32 %s75, 1
        %s174 = smul.addr %s173, 64
        %s175 = scalar_lea.vmem [#allocation7], %s174
        %v176 = vld [vmem:[%s150] sm:$0xff]
        %v177 = vld [vmem:[%s150 + $0x8] sm:$0xff]
        %v178 = vld [vmem:[%s150 + $0x10] sm:$0xff]
        %v179 = vld [vmem:[%s150 + $0x18] sm:$0xff]
        %v180 = vld [vmem:[%s150 + $0x20] sm:$0xff]
        %v181 = vld [vmem:[%s150 + $0x28] sm:$0xff]
        %v182 = vld [vmem:[%s150 + $0x30] sm:$0xff]
        %v183 = vld [vmem:[%s150 + $0x38] sm:$0xff]
        %v184 = vadd.f32 %v176, %v177
        %185 = vadd.xlane.f32.xlu0 %v184
        %v186 = vpop.xlane.xlu0 %185
        %v187 = vadd.f32 %v178, %v179
        %188 = vadd.xlane.f32.xlu0 %v187
        %v189 = vpop.xlane.xlu0 %188
        %v190 = vadd.f32 %v180, %v181
        %191 = vadd.xlane.f32.xlu0 %v190
        %v192 = vpop.xlane.xlu0 %191
        %v193 = vadd.f32 %v182, %v183
        %194 = vadd.xlane.f32.xlu0 %v193
        %v195 = vpop.xlane.xlu0 %194
        %v196 = vrcp.pop 256.0
        %v197 = vmul.f32 %v186, %v196
        %v198 = vmul.f32 %v189, %v196
        %v199 = vmul.f32 %v192, %v196
        %v200 = vmul.f32 %v195, %v196
        %v201 = vlaneseq
        %v202 = vshrl.u32 %v201, 7
        %v203 = vadd.s32 %v202, 8
        %v204 = vadd.s32 %v202, 16
        %v205 = vadd.s32 %v202, 24
        %v206 = vrot.slane %v197, 7
        %v207 = vrot.slane %v198, 7
        %v208 = vrot.slane %v199, 7
        %v209 = vrot.slane %v200, 7
        %vm210 = vcmp.lt.s32.totalorder %v202, 1
        %v211 = vsel %vm210, %v208, %v209
        %v212 = vsel %vm210, %v207, %v208
        %v213 = vsel %vm210, %v206, %v207
        %v214 = vsel %vm210, %v209, %v206
        %v215 = vadd.s32 %v202, 4294967295
        %v216 = vadd.s32 %v203, 4294967295
        %v217 = vadd.s32 %v204, 4294967295
        %v218 = vadd.s32 %v205, 4294967295
        %vm219 = vcmp.ge.s32.totalorder %v215, 0
        %vm220 = vcmp.ge.s32.totalorder %v216, 0
        %vm221 = vcmp.ge.s32.totalorder %v217, 0
        %vm222 = vcmp.ge.s32.totalorder %v218, 0
        %vm223 = vcmp.lt.s32.totalorder %v215, 32
        %vm224 = vcmp.lt.s32.totalorder %v216, 32
        %vm225 = vcmp.lt.s32.totalorder %v217, 32
        %vm226 = vcmp.lt.s32.totalorder %v218, 32
        %vm227 = vmand %vm219, %vm223
        %vm228 = vmand %vm220, %vm224
        %vm229 = vmand %vm221, %vm225
        %vm230 = vmand %vm222, %vm226
        %v231 = vsel %vm227, %v214, 0.0
        %v232 = vsel %vm228, %v213, 0.0
        %v233 = vsel %vm229, %v212, 0.0
        %v234 = vsel %vm230, %v211, 0.0
        %s235 = sld [smem:[#allocation6]]
        %v236 = vstv %s235
        %v237 = vmul.f32 %v236, %v231
        %v238 = vmul.f32 %v236, %v232
        %v239 = vmul.f32 %v236, %v233
        %v240 = vmul.f32 %v236, %v234
        %v241 = vadd.f32 %v237, 0.0
        %v242 = vadd.f32 %v238, 0.0
        %v243 = vadd.f32 %v239, 0.0
        %v244 = vadd.f32 %v240, 0.0
        %s245 = sld [smem:[#allocation6 + $0x1]]
        %v246 = vstv %s245
        %v247 = vmul.f32 %v246, %v197
        %v248 = vmul.f32 %v246, %v198
        %v249 = vmul.f32 %v246, %v199
        %v250 = vmul.f32 %v246, %v200
        %v251 = vadd.f32 %v241, %v247
        %v252 = vadd.f32 %v242, %v248
        %v253 = vadd.f32 %v243, %v249
        %v254 = vadd.f32 %v244, %v250
        %v255 = vrot.slane %v197, 1
        %v256 = vrot.slane %v198, 1
        %v257 = vrot.slane %v199, 1
        %v258 = vrot.slane %v200, 1
        %vm259 = vcmp.lt.s32.totalorder %v202, 7
        %v260 = vsel %vm259, %v257, %v258
        %v261 = vsel %vm259, %v256, %v257
        %v262 = vsel %vm259, %v255, %v256
        %v263 = vsel %vm259, %v258, %v255
        %v264 = vadd.s32 %v202, 1
        %v265 = vadd.s32 %v203, 1
        %v266 = vadd.s32 %v204, 1
        %v267 = vadd.s32 %v205, 1
        %vm268 = vcmp.ge.s32.totalorder %v264, 0
        %vm269 = vcmp.ge.s32.totalorder %v265, 0
        %vm270 = vcmp.ge.s32.totalorder %v266, 0
        %vm271 = vcmp.ge.s32.totalorder %v267, 0
        %vm272 = vcmp.lt.s32.totalorder %v264, 32
        %vm273 = vcmp.lt.s32.totalorder %v265, 32
        %vm274 = vcmp.lt.s32.totalorder %v266, 32
        %vm275 = vcmp.lt.s32.totalorder %v267, 32
        %vm276 = vmand %vm268, %vm272
        %vm277 = vmand %vm269, %vm273
        %vm278 = vmand %vm270, %vm274
        %vm279 = vmand %vm271, %vm275
        %v280 = vsel %vm276, %v262, 0.0
        %v281 = vsel %vm277, %v261, 0.0
        %v282 = vsel %vm278, %v260, 0.0
        %v283 = vsel %vm279, %v263, 0.0
        %s284 = sld [smem:[#allocation6 + $0x2]]
        %v285 = vstv %s284
        %v286 = vmul.f32 %v285, %v280
        %v287 = vmul.f32 %v285, %v281
        %v288 = vmul.f32 %v285, %v282
        %v289 = vmul.f32 %v285, %v283
        %v290 = vadd.f32 %v251, %v286
        %v291 = vadd.f32 %v252, %v287
        %v292 = vadd.f32 %v253, %v288
        %v293 = vadd.f32 %v254, %v289
        %v294 = vxor.u32 %v290, 2147483648
        %v295 = vxor.u32 %v291, 2147483648
        %v296 = vxor.u32 %v292, 2147483648
        %v297 = vxor.u32 %v293, 2147483648
        %v298 = vmul.f32 %v294, 1.442695
        %v299 = vpow.pop %v298
        %v300 = vmul.f32 %v295, 1.442695
        %v301 = vpow.pop %v300
        %v302 = vmul.f32 %v296, 1.442695
        %v303 = vpow.pop %v302
        %v304 = vmul.f32 %v297, 1.442695
        %v305 = vpow.pop %v304
        %v306 = vadd.f32 %v299, 1.0
        %v307 = vadd.f32 %v301, 1.0
        %v308 = vadd.f32 %v303, 1.0
        %v309 = vadd.f32 %v305, 1.0
        %v310 = vrcp.pop %v306
        %v311 = vmul.f32 1.0, %v310
        %v312 = vrcp.pop %v307
        %v313 = vmul.f32 1.0, %v312
        %v314 = vrcp.pop %v308
        %v315 = vmul.f32 1.0, %v314
        %v316 = vrcp.pop %v309
        %v317 = vmul.f32 1.0, %v316
        %319 = vset.pattern.permute.xlu0 0
        %320 = vperm.xlu0 %319, %v311
        %v321 = vpop.permute.xlu0 %320
        %324 = vset.pattern.permute.xlu0 0
        %325 = vperm.xlu0 %324, %v313
        %v326 = vpop.permute.xlu0 %325
        %329 = vset.pattern.permute.xlu0 0
        %330 = vperm.xlu0 %329, %v315
        %v331 = vpop.permute.xlu0 %330
        %334 = vset.pattern.permute.xlu0 0
        %335 = vperm.xlu0 %334, %v317
        %v336 = vpop.permute.xlu0 %335
        %v338 = vmul.f32 %v176, %v321
        %v339 = vmul.f32 %v177, %v321
        %v340 = vmul.f32 %v178, %v326
        %v341 = vmul.f32 %v179, %v326
        %v342 = vmul.f32 %v180, %v331
        %v343 = vmul.f32 %v181, %v331
        %v344 = vmul.f32 %v182, %v336
        %v345 = vmul.f32 %v183, %v336
        %346 = vst [vmem:[%s175] sm:$0xff] %v338
        %347 = vst [vmem:[%s175 + $0x8] sm:$0xff] %v339
        %348 = vst [vmem:[%s175 + $0x10] sm:$0xff] %v340
        %349 = vst [vmem:[%s175 + $0x18] sm:$0xff] %v341
        %350 = vst [vmem:[%s175 + $0x20] sm:$0xff] %v342
        %351 = vst [vmem:[%s175 + $0x28] sm:$0xff] %v343
        %352 = vst [vmem:[%s175 + $0x30] sm:$0xff] %v344
        %353 = vst [vmem:[%s175 + $0x38] sm:$0xff] %v345
        %s354 = sand.u32 %s75, 1
        %s355 = scalar_lea.sflag [#allocation4], %s354
        %s356 = sand.u32 %s75, 1
        %s357 = smul.addr %s356, 64
        %s358 = scalar_lea.vmem [#allocation7], %s357
        // Predicated region
        $region37: #{tpu_custom_call.1} parent=27 // pred_check
          %p359 = pneg %p85
        $region38: #{tpu_custom_call.1} parent=27 // pred_check_branch
          %361 = sbr.rel (%p359) target = $region40
        $region39: #{tpu_custom_call.1} parent=27 // pred_region
          %s363 = ssub.s32 1024, 1024
          %364 = vsyncadd %s355, %s363
          %s365 = smul.addr %s20, 8
          %s366 = smul.addr %s365, 128
          %s367 = scalar_lea.hbm %s2, %s366
          %s368 = sshll.u32 %s358, 4
          %s369 = int_to_ptr.vmem [resolvable:$true] %s368
          %374 = dma.vmem_to_hbm [thread:$0]  %s369, 1024, %s367, %s355, 256, 256, 16
        $region40: #{tpu_custom_call.1} parent=27 // pred_fallthru
          _
      $region28: #{tpu_custom_call.1} parent=5 // pred_fallthru
        _
      %p375 = scmp.le.s32.totalorder 2, %s15
      // Predicated region
      $region41: #{tpu_custom_call.1} parent=5 // pred_check
        %p376 = pneg %p375
      $region42: #{tpu_custom_call.1} parent=5 // pred_check_branch
        %378 = sbr.rel (%p376) target = $region44
      $region43: #{tpu_custom_call.1} parent=5 // pred_region
        %s379 = ssub.s32 %s15, 2
        // Predicated region
        $region45: #{tpu_custom_call.1} parent=43 // pred_check
          %p380 = pneg %p91
        $region46: #{tpu_custom_call.1} parent=43 // pred_check_branch
          %382 = sbr.rel (%p380) target = $region48
        $region47: #{tpu_custom_call.1} parent=43 // pred_region
          %s383 = sand.u32 %s76, 1
          %s384 = scalar_lea.sflag [#allocation4], %s383
          %s385 = sand.u32 %s76, 1
          %s386 = smul.addr %s385, 64
          %s387 = scalar_lea.vmem [#allocation7], %s386
          %388 = dma.done %s384, 1024
        $region48: #{tpu_custom_call.1} parent=43 // pred_fallthru
          _
      $region44: #{tpu_custom_call.1} parent=5 // pred_fallthru
        _
    $region6: #{tpu_custom_call.1} parent=1 // loop_footer
      %s19 = sadd.s32 1, %s15
    $region7: #{tpu_custom_call.1} parent=1 // loop_footer_branch
      %14 = sbr.rel target = $region3
    $region8: #{tpu_custom_call.1} parent=1 // loop_exit
      _
    %389 = vsyncpa [#allocation3], 1
    %s390 = scalar_lea.sflag [#allocation3], 1
    %391 = vsyncpa %s390, 1
    %392 = vsyncpa [#allocation4], 1
    %s393 = scalar_lea.sflag [#allocation4], 1
    %394 = vsyncpa %s393, 1
    %395 = vsyncpa [#allocation5], 1
    %s396 = scalar_lea.sflag [#allocation5], 1
    %397 = vsyncpa %s396, 1

</llo_original>
